<compile_context>
chip_gen: v5e
topology: v5e:2x2
jax: 0.10.0
libtpu: 0.0.40
codegen_flags: <defaults>
</compile_context>

<pallas_src>
import functools

import jax
import jax.numpy as jnp
import numpy as np
from jax.experimental import pallas as pl
from jax.experimental.pallas import tpu as pltpu


def _round_up(x, m):
    return (x + m - 1) // m * m


def _vmem_capacity_bytes():
    try:
        info = pltpu.get_tpu_info()
        cap = getattr(info, "vmem_capacity_bytes", None)
        if cap:
            return int(cap)
    except Exception:
        pass
    return 64 << 20  # conservative (v7x per-TC) fallback


def _full_loss_kernel(logits_ref, vid_ref, snp_ref, tgt_ref, out_ref,
                      ce_acc, emb_acc, *, n_batch, inv_b, mix_inv_be, loss_type):
    c = pl.program_id(0)            # parallel slice (megacore on v7x)
    i = pl.program_id(1)            # sequential batch-tile step within the slice
    tb, nc = logits_ref.shape

    @pl.when(i == 0)
    def _init():
        ce_acc[...] = jnp.zeros_like(ce_acc)
        emb_acc[...] = jnp.zeros_like(emb_acc)

    # Global batch-tile index for this grid point and per-row validity mask.
    step = c * pl.num_programs(1) + i
    row_ids = step * tb + jax.lax.broadcasted_iota(jnp.int32, (tb, 1), 0)
    row_valid = row_ids < n_batch                           # (TB, 1) bool

    # ---- Cross-entropy partial sums: logsumexp(logits) - logits[target] -------------
    logits = logits_ref[...].astype(jnp.float32)            # (TB, NC)
    tgt = tgt_ref[...]                                       # (TB, 1) int32
    col_ids = jax.lax.broadcasted_iota(jnp.int32, (tb, nc), 1)

    row_max = jnp.max(logits, axis=-1, keepdims=True)
    sumexp = jnp.sum(jnp.exp(logits - row_max), axis=-1, keepdims=True)
    lse = row_max + jnp.log(sumexp)
    picked = jnp.sum(jnp.where(col_ids == tgt, logits, jnp.float32(0.0)),
                     axis=-1, keepdims=True)
    ce_acc[...] += jnp.where(row_valid, lse - picked, jnp.float32(0.0))

    # ---- Embedding-loss partial sums (masked; no reliance on padded inputs) ---------
    diff = snp_ref[...].astype(jnp.float32) - vid_ref[...].astype(jnp.float32)
    if loss_type == "l2":
        per_row = jnp.sum(diff * diff, axis=-1, keepdims=True)
    else:  # "l1"
        per_row = jnp.sum(jnp.abs(diff), axis=-1, keepdims=True)
    emb_acc[...] += jnp.where(row_valid, per_row, jnp.float32(0.0))

    # ---- Finalize: write this slice's partial loss to a lane-dense (1,128) tile -----
    @pl.when(i == pl.num_programs(1) - 1)
    def _finalize():
        partial = (jnp.sum(ce_acc[...]) * jnp.float32(inv_b)
                   + jnp.sum(emb_acc[...]) * jnp.float32(mix_inv_be))
        out_ref[...] = jnp.zeros_like(out_ref) + partial


def full_loss(embedding_output, target_classes,
              embedding_loss_mixture=0.01, loss_type="l2"):
    """FullLoss.forward: (classification, video_embedding, snps_embedding), targets -> scalar."""
    if loss_type not in ("l2", "l1"):
        raise ValueError(f"unsupported loss_type: {loss_type}")
    classification, video_embedding, snps_embedding = embedding_output
    assert video_embedding.shape == snps_embedding.shape
    B, NC = classification.shape
    E = video_embedding.shape[1]
    assert video_embedding.shape[0] == B

    f32 = jnp.float32
    targets = target_classes.astype(jnp.int32).reshape(B, 1)   # tiny (B,1) reshape only

    # ---- Generation-aware tiling -----------------------------------------------------
    vmem_cap = _vmem_capacity_bytes()                 # 64 MiB v7x, 128 MiB v5e/v6e
    vmem_budget = max(32 << 20, min(vmem_cap - (16 << 20), 96 << 20))

    lsz = jnp.dtype(classification.dtype).itemsize
    esz = jnp.dtype(video_embedding.dtype).itemsize
    NCp = _round_up(NC, 128)
    Ep = _round_up(E, 128)

    def tile_bytes(tb):               # VMEM footprint of ONE buffer of all input tiles
        return tb * (lsz * NCp + 2 * esz * Ep + 4 * 128)

    # Biggest batch tile (multiple of 8, <= 1024) whose double-buffered inputs fit.
    TB = min(1024, _round_up(B, 8))
    while TB > 8 and 2 * tile_bytes(TB) + (4 << 20) > vmem_budget:
        TB = _round_up(TB // 2, 8)
    if TB >= B:
        TB = B                        # single block == full batch dim (always legal)
    # TODO(synk): for very large vocabularies (>32K classes) add a class-axis grid
    # dimension with an online logsumexp so TB can stay large within VMEM.

    n_blocks = (B + TB - 1) // TB
    n_slices = 2 if n_blocks >= 2 else 1              # v7x: one slice per TensorCore
    steps = (n_blocks + n_slices - 1) // n_slices

    def batch_map(c, i):
        # Clamp so the (possibly) extra step of the last slice re-reads a valid block;
        # its rows are masked out in-kernel by row_valid.
        return (jnp.minimum(c * steps + i, n_blocks - 1), 0)

    kernel = functools.partial(
        _full_loss_kernel,
        n_batch=B,
        inv_b=1.0 / float(B),
        mix_inv_be=float(embedding_loss_mixture) / float(B * E),
        loss_type=loss_type)

    cost = pl.CostEstimate(
        flops=int(6 * B * NC + 4 * B * E),
        transcendentals=int(B * NC + B),
        bytes_accessed=int(classification.size * lsz
                           + (video_embedding.size + snps_embedding.size) * esz
                           + B * 4 + n_slices * 128 * 4))

    out = pl.pallas_call(
        kernel,
        out_shape=jax.ShapeDtypeStruct((n_slices, 128), f32),
        grid=(n_slices, steps),
        in_specs=[
            pl.BlockSpec((TB, NC), batch_map),   # full lane extent: no pad copy needed
            pl.BlockSpec((TB, E), batch_map),
            pl.BlockSpec((TB, E), batch_map),
            pl.BlockSpec((TB, 1), batch_map),
        ],
        out_specs=pl.BlockSpec((1, 128), lambda c, i: (c, 0)),
        scratch_shapes=[
            pltpu.VMEM((TB, 1), f32),   # cross-entropy per-row partial sums
            pltpu.VMEM((TB, 1), f32),   # embedding-loss per-row partial sums
        ],
        compiler_params=pltpu.CompilerParams(
            # Leading axis shards across TensorCores (v7x); the batch-step axis carries
            # the resident accumulators so it must stay "arbitrary".
            dimension_semantics=("parallel", "arbitrary"),
            vmem_limit_bytes=int(vmem_budget),
        ),
        cost_estimate=cost,
    )(classification, video_embedding, snps_embedding, targets)

    return jnp.sum(out[:, 0])


if __name__ == "__main__":
    # Small shapes consistent with the module: batch=2, n_classes=8, embedding_size=32.
    B, NC, E = 2, 8, 32
    mixture = 0.01

    key = jax.random.PRNGKey(0)
    k1, k2, k3, k4 = jax.random.split(key, 4)
    classification = jax.random.normal(k1, (B, NC), dtype=jnp.float32)
    video_embedding = jax.random.normal(k2, (B, E), dtype=jnp.float32)
    snps_embedding = video_embedding + 0.1 * jax.random.normal(k3, (B, E), dtype=jnp.float32)
    target_classes = jax.random.randint(k4, (B,), 0, NC, dtype=jnp.int32)

    emb_out = (classification, video_embedding, snps_embedding)

    loss_l2 = full_loss(emb_out, target_classes, embedding_loss_mixture=mixture, loss_type="l2")
    loss_l1 = full_loss(emb_out, target_classes, embedding_loss_mixture=mixture, loss_type="l1")
    jax.block_until_ready((loss_l2, loss_l1))

    # Pure-JAX reference (matches torch defaults: mean-reduced CE and MSE/L1).
    lse = jax.scipy.special.logsumexp(classification, axis=-1)
    picked = classification[jnp.arange(B), target_classes]
    ce_ref = jnp.mean(lse - picked)
    diff = snps_embedding - video_embedding
    ref_l2 = ce_ref + mixture * jnp.mean(diff * diff)
    ref_l1 = ce_ref + mixture * jnp.mean(jnp.abs(diff))

    np.testing.assert_allclose(np.asarray(loss_l2), np.asarray(ref_l2), rtol=1e-5, atol=1e-5)
    np.testing.assert_allclose(np.asarray(loss_l1), np.asarray(ref_l1), rtol=1e-5, atol=1e-5)

    print("KERNEL_OK")
</pallas_src>

<mosaic_0001>
module attributes {stable_mosaic.version = 11 : i64} {
  func.func @_full_loss_kernel(%arg0: i32, %arg1: i32, %arg2: memref<2x8xf32, #tpu.memory_space<vmem>>, %arg3: memref<2x32xf32, #tpu.memory_space<vmem>>, %arg4: memref<2x32xf32, #tpu.memory_space<vmem>>, %arg5: memref<2x1xi32, #tpu.memory_space<vmem>>, %arg6: memref<1x128xf32, #tpu.memory_space<vmem>>, %arg7: memref<2x1xf32, #tpu.memory_space<vmem>>, %arg8: memref<2x1xf32, #tpu.memory_space<vmem>>) attributes {dimension_semantics = [#tpu.dimension_semantics<parallel>, #tpu.dimension_semantics<arbitrary>], iteration_bounds = array<i64: 1, 1>, scalar_prefetch = 0 : i64, scratch_operands = 2 : i64, tpu.core_type = #tpu.core_type<tc>, window_params = [{transform_indices = @transform_0, window_bounds = array<i64: 2, 8>}, {transform_indices = @transform_1, window_bounds = array<i64: 2, 32>}, {transform_indices = @transform_2, window_bounds = array<i64: 2, 32>}, {transform_indices = @transform_3, window_bounds = array<i64: 2, 1>}, {transform_indices = @transform_4, window_bounds = array<i64: 1, 128>}]} {
    %c0_i32 = arith.constant 0 : i32
    %0 = arith.cmpi eq, %arg1, %c0_i32 : i32
    %1 = arith.extui %0 : i1 to i32
    %c0_i32_0 = arith.constant 0 : i32
    %2 = arith.cmpi ne, %1, %c0_i32_0 : i32
    scf.if %2 {
      %cst_25 = arith.constant 0.000000e+00 : f32
      %49 = vector.broadcast %cst_25 : f32 to vector<2x1xf32>
      %c0_26 = arith.constant 0 : index
      %c0_27 = arith.constant 0 : index
      %50 = vector.load %arg7[%c0_26, %c0_27] : memref<2x1xf32, #tpu.memory_space<vmem>>, vector<2x1xf32>
      tpu.vector_store %arg7[%c0_26, %c0_27], %49 {strides = array<i32>} : memref<2x1xf32, #tpu.memory_space<vmem>>, vector<2x1xf32>,
      %cst_28 = arith.constant 0.000000e+00 : f32
      %51 = vector.broadcast %cst_28 : f32 to vector<2x1xf32>
      %c0_29 = arith.constant 0 : index
      %c0_30 = arith.constant 0 : index
      %52 = vector.load %arg8[%c0_29, %c0_30] : memref<2x1xf32, #tpu.memory_space<vmem>>, vector<2x1xf32>
      tpu.vector_store %arg8[%c0_29, %c0_30], %51 {strides = array<i32>} : memref<2x1xf32, #tpu.memory_space<vmem>>, vector<2x1xf32>,
    } else {
    }
    %c1_i32 = arith.constant 1 : i32
    %3 = arith.muli %arg0, %c1_i32 : i32
    %4 = arith.addi %3, %arg1 : i32
    %c2_i32 = arith.constant 2 : i32
    %5 = arith.muli %4, %c2_i32 : i32
    %6 = tpu.iota {dimensions = array<i32: 0>} : vector<2x1xi32>
    %7 = vector.broadcast %5 : i32 to vector<2x1xi32>
    %8 = arith.addi %7, %6 : vector<2x1xi32>
    %c2_i32_1 = arith.constant 2 : i32
    %9 = vector.broadcast %c2_i32_1 : i32 to vector<2x1xi32>
    %10 = arith.cmpi slt, %8, %9 : vector<2x1xi32>
    %c0 = arith.constant 0 : index
    %c0_2 = arith.constant 0 : index
    %11 = vector.load %arg2[%c0, %c0_2] : memref<2x8xf32, #tpu.memory_space<vmem>>, vector<2x8xf32>
    %c0_3 = arith.constant 0 : index
    %c0_4 = arith.constant 0 : index
    %12 = vector.load %arg5[%c0_3, %c0_4] : memref<2x1xi32, #tpu.memory_space<vmem>>, vector<2x1xi32>
    %13 = tpu.iota {dimensions = array<i32: 1>} : vector<2x8xi32>
    %cst = arith.constant dense<0xFF800000> : vector<2xf32>
    %14 = vector.multi_reduction <maximumf>, %11, %cst [1] : vector<2x8xf32> to vector<2xf32>
    %15 = vector.shape_cast %14 : vector<2xf32> to vector<2x1xf32>
    %16 = vector.broadcast %15 : vector<2x1xf32> to vector<2x8xf32>
    %17 = arith.subf %11, %16 : vector<2x8xf32>
    %18 = math.exp %17 : vector<2x8xf32>
    %cst_5 = arith.constant dense<0.000000e+00> : vector<2xf32>
    %19 = vector.multi_reduction <add>, %18, %cst_5 [1] : vector<2x8xf32> to vector<2xf32>
    %20 = vector.shape_cast %19 : vector<2xf32> to vector<2x1xf32>
    %21 = math.log %20 : vector<2x1xf32>
    %22 = arith.addf %15, %21 : vector<2x1xf32>
    %23 = vector.broadcast %12 : vector<2x1xi32> to vector<2x8xi32>
    %24 = arith.cmpi eq, %13, %23 : vector<2x8xi32>
    %cst_6 = arith.constant 0.000000e+00 : f32
    %25 = vector.broadcast %cst_6 : f32 to vector<2x8xf32>
    %26 = arith.select %24, %11, %25 : vector<2x8xi1>, vector<2x8xf32>
    %cst_7 = arith.constant dense<0.000000e+00> : vector<2xf32>
    %27 = vector.multi_reduction <add>, %26, %cst_7 [1] : vector<2x8xf32> to vector<2xf32>
    %28 = vector.shape_cast %27 : vector<2xf32> to vector<2x1xf32>
    %c0_8 = arith.constant 0 : index
    %c0_9 = arith.constant 0 : index
    %29 = vector.load %arg7[%c0_8, %c0_9] : memref<2x1xf32, #tpu.memory_space<vmem>>, vector<2x1xf32>
    %30 = arith.subf %22, %28 : vector<2x1xf32>
    %cst_10 = arith.constant 0.000000e+00 : f32
    %31 = vector.broadcast %cst_10 : f32 to vector<2x1xf32>
    %32 = arith.select %10, %30, %31 : vector<2x1xi1>, vector<2x1xf32>
    %33 = arith.addf %29, %32 : vector<2x1xf32>
    %c0_11 = arith.constant 0 : index
    %c0_12 = arith.constant 0 : index
    %34 = vector.load %arg7[%c0_11, %c0_12] : memref<2x1xf32, #tpu.memory_space<vmem>>, vector<2x1xf32>
    tpu.vector_store %arg7[%c0_11, %c0_12], %33 {strides = array<i32>} : memref<2x1xf32, #tpu.memory_space<vmem>>, vector<2x1xf32>,
    %c0_13 = arith.constant 0 : index
    %c0_14 = arith.constant 0 : index
    %35 = vector.load %arg4[%c0_13, %c0_14] : memref<2x32xf32, #tpu.memory_space<vmem>>, vector<2x32xf32>
    %c0_15 = arith.constant 0 : index
    %c0_16 = arith.constant 0 : index
    %36 = vector.load %arg3[%c0_15, %c0_16] : memref<2x32xf32, #tpu.memory_space<vmem>>, vector<2x32xf32>
    %37 = arith.subf %35, %36 : vector<2x32xf32>
    %38 = arith.mulf %37, %37 : vector<2x32xf32>
    %cst_17 = arith.constant dense<0.000000e+00> : vector<2xf32>
    %39 = vector.multi_reduction <add>, %38, %cst_17 [1] : vector<2x32xf32> to vector<2xf32>
    %40 = vector.shape_cast %39 : vector<2xf32> to vector<2x1xf32>
    %c0_18 = arith.constant 0 : index
    %c0_19 = arith.constant 0 : index
    %41 = vector.load %arg8[%c0_18, %c0_19] : memref<2x1xf32, #tpu.memory_space<vmem>>, vector<2x1xf32>
    %cst_20 = arith.constant 0.000000e+00 : f32
    %42 = vector.broadcast %cst_20 : f32 to vector<2x1xf32>
    %43 = arith.select %10, %40, %42 : vector<2x1xi1>, vector<2x1xf32>
    %44 = arith.addf %41, %43 : vector<2x1xf32>
    %c0_21 = arith.constant 0 : index
    %c0_22 = arith.constant 0 : index
    %45 = vector.load %arg8[%c0_21, %c0_22] : memref<2x1xf32, #tpu.memory_space<vmem>>, vector<2x1xf32>
    tpu.vector_store %arg8[%c0_21, %c0_22], %44 {strides = array<i32>} : memref<2x1xf32, #tpu.memory_space<vmem>>, vector<2x1xf32>,
    %c0_i32_23 = arith.constant 0 : i32
    %46 = arith.cmpi eq, %arg1, %c0_i32_23 : i32
    %47 = arith.extui %46 : i1 to i32
    %c0_i32_24 = arith.constant 0 : i32
    %48 = arith.cmpi ne, %47, %c0_i32_24 : i32
    scf.if %48 {
      %c0_25 = arith.constant 0 : index
      %c0_26 = arith.constant 0 : index
      %49 = vector.load %arg7[%c0_25, %c0_26] : memref<2x1xf32, #tpu.memory_space<vmem>>, vector<2x1xf32>
      %50 = vector.shape_cast %49 : vector<2x1xf32> to vector<1x2x1xf32>
      %cst_27 = arith.constant dense<0.000000e+00> : vector<1xf32>
      %51 = vector.multi_reduction <add>, %50, %cst_27 [1, 2] : vector<1x2x1xf32> to vector<1xf32>
      %52 = vector.shape_cast %51 : vector<1xf32> to vector<1x1x1xf32>
      %53 = vector.extract %52[0, 0, 0] : f32 from vector<1x1x1xf32>
      %cst_28 = arith.constant 5.000000e-01 : f32
      %54 = arith.mulf %53, %cst_28 : f32
      %c0_29 = arith.constant 0 : index
      %c0_30 = arith.constant 0 : index
      %55 = vector.load %arg8[%c0_29, %c0_30] : memref<2x1xf32, #tpu.memory_space<vmem>>, vector<2x1xf32>
      %56 = vector.shape_cast %55 : vector<2x1xf32> to vector<1x2x1xf32>
      %cst_31 = arith.constant dense<0.000000e+00> : vector<1xf32>
      %57 = vector.multi_reduction <add>, %56, %cst_31 [1, 2] : vector<1x2x1xf32> to vector<1xf32>
      %58 = vector.shape_cast %57 : vector<1xf32> to vector<1x1x1xf32>
      %59 = vector.extract %58[0, 0, 0] : f32 from vector<1x1x1xf32>
      %cst_32 = arith.constant 1.562500e-04 : f32
      %60 = arith.mulf %59, %cst_32 : f32
      %61 = arith.addf %54, %60 : f32
      %cst_33 = arith.constant 0.000000e+00 : f32
      %62 = vector.broadcast %cst_33 : f32 to vector<1x128xf32>
      %63 = vector.broadcast %61 : f32 to vector<1x128xf32>
      %64 = arith.addf %62, %63 : vector<1x128xf32>
      %c0_34 = arith.constant 0 : index
      %c0_35 = arith.constant 0 : index
      %65 = vector.load %arg6[%c0_34, %c0_35] : memref<1x128xf32, #tpu.memory_space<vmem>>, vector<1x128xf32>
      tpu.vector_store %arg6[%c0_34, %c0_35], %64 {strides = array<i32>} : memref<1x128xf32, #tpu.memory_space<vmem>>, vector<1x128xf32>,
    } else {
    }
    return
  }
  func.func @transform_0(%arg0: i32, %arg1: i32) -> (i32, i32) {
    %c1_i32 = arith.constant 1 : i32
    %0 = arith.muli %arg0, %c1_i32 : i32
    %1 = arith.addi %0, %arg1 : i32
    %c0_i32 = arith.constant 0 : i32
    %2 = arith.minsi %1, %c0_i32 : i32
    %c0_i32_0 = arith.constant 0 : i32
    %c0_i32_1 = arith.constant 0 : i32
    return %2, %c0_i32_0 : i32, i32
  }
  func.func @transform_1(%arg0: i32, %arg1: i32) -> (i32, i32) {
    %c1_i32 = arith.constant 1 : i32
    %0 = arith.muli %arg0, %c1_i32 : i32
    %1 = arith.addi %0, %arg1 : i32
    %c0_i32 = arith.constant 0 : i32
    %2 = arith.minsi %1, %c0_i32 : i32
    %c0_i32_0 = arith.constant 0 : i32
    %c0_i32_1 = arith.constant 0 : i32
    return %2, %c0_i32_0 : i32, i32
  }
  func.func @transform_2(%arg0: i32, %arg1: i32) -> (i32, i32) {
    %c1_i32 = arith.constant 1 : i32
    %0 = arith.muli %arg0, %c1_i32 : i32
    %1 = arith.addi %0, %arg1 : i32
    %c0_i32 = arith.constant 0 : i32
    %2 = arith.minsi %1, %c0_i32 : i32
    %c0_i32_0 = arith.constant 0 : i32
    %c0_i32_1 = arith.constant 0 : i32
    return %2, %c0_i32_0 : i32, i32
  }
  func.func @transform_3(%arg0: i32, %arg1: i32) -> (i32, i32) {
    %c1_i32 = arith.constant 1 : i32
    %0 = arith.muli %arg0, %c1_i32 : i32
    %1 = arith.addi %0, %arg1 : i32
    %c0_i32 = arith.constant 0 : i32
    %2 = arith.minsi %1, %c0_i32 : i32
    %c0_i32_0 = arith.constant 0 : i32
    %c0_i32_1 = arith.constant 0 : i32
    return %2, %c0_i32_0 : i32, i32
  }
  func.func @transform_4(%arg0: i32, %arg1: i32) -> (i32, i32) {
    %c0_i32 = arith.constant 0 : i32
    %c0_i32_0 = arith.constant 0 : i32
    return %arg0, %c0_i32 : i32, i32
  }
}

</mosaic_0001>

<llo_original>
// kernel: tpu_custom_call.1
$region0: #{tpu_custom_call.1}
  #allocation0 [shape = 'u32[]', space=smem, size = 0x4, offset = 0x4, fixed_abs, tag = 'smem constant byte address 0x4 - core index']
  #allocation1 [shape = 'u32[72,128]{1,0:T(1,128)}', space=vmem, size = 0x9000, scoped, tag = 'internal scratch']
  #allocation2 [shape = 'f32[2,1]{1,0:T(2,128)}', space=vmem, size = 0x400, scoped, tag = 'scratch operand']
  #allocation3 [shape = 'f32[2,1]{1,0:T(2,128)}', space=vmem, size = 0x400, scoped, tag = 'scratch operand']
  %s0 = inlined_call_operand.vmem [shape: f32[2,8], index: 0, kind: input, shape index: {}]
  %s1 = inlined_call_operand.hbm [shape: f32[2,32], index: 1, kind: input, shape index: {}]
  %s2 = inlined_call_operand.vmem [shape: f32[2,32], index: 2, kind: input, shape index: {}]
  %s3 = inlined_call_operand.vmem [shape: s32[2,1], index: 3, kind: input, shape index: {}]
  %s4 = inlined_call_operand.hbm [shape: f32[1,128], index: 4, kind: output, shape index: {}]
  %s5 = sld [smem:[#allocation0]]
  $region38: #{tpu_custom_call.1} parent=0
    _
  %s7 = ssub.s32 1, %s5
  %s8 = scalar_select 0, %s7, %s5
  $region1: #{tpu_custom_call.1} parent=0
    #allocation4 [shape = 'u8[1024]{0}', space=vmem, size = 0x400, scoped, tag = 'input window, operand 1, single buffered']
    #allocation5 [shape = 's32[1]{0}', space=sflag, size = 0x4, scoped, tag = 'scoped memory for tpu_custom_call.1']
    #allocation6 [shape = 's32[1]{0}', space=sflag, size = 0x4, scoped, tag = 'scoped memory for tpu_custom_call.1']
    #allocation7 [shape = 'u8[512]{0}', space=vmem, size = 0x400, scoped, tag = 'output window, operand 0, single buffered']
    %9 = vsyncpa [#allocation5], 0
    %10 = vsyncpa [#allocation6], 0
    // Predicated region
    $region2: #{tpu_custom_call.1} parent=1 // pred_check
      _
    $region3: #{tpu_custom_call.1} parent=1 // pred_check_branch
      %12 = sbr.rel (0) target = $region5
    $region4: #{tpu_custom_call.1} parent=1 // pred_region
      %s13 = sadd.s32 0, 0
      %p14 = scmp.lt.s32.totalorder %s13, 0
      %s15 = scalar_select %p14, %s13, 0
      %p16 = scmp.lt.s32.totalorder %s15, 0
      %s17 = scalar_select %p16, %s15, 0
      %s18 = smul.addr %s17, 2
      %s19 = scalar_lea.vmem %s0, %s18
      %s20 = sadd.s32 0, 0
      %p21 = scmp.lt.s32.totalorder %s20, 0
      %s22 = scalar_select %p21, %s20, 0
    $region5: #{tpu_custom_call.1} parent=1 // pred_fallthru
      _
    // Predicated region
    $region6: #{tpu_custom_call.1} parent=1 // pred_check
      _
    $region7: #{tpu_custom_call.1} parent=1 // pred_check_branch
      %24 = sbr.rel (0) target = $region9
    $region8: #{tpu_custom_call.1} parent=1 // pred_region
      %s25 = sadd.s32 0, 0
      %p26 = scmp.lt.s32.totalorder %s25, 0
      %s27 = scalar_select %p26, %s25, 0
      %29 = vsyncadd [#allocation5], 0
      %s30 = smul.addr %s27, 2
      %s31 = scalar_lea.hbm %s1, %s30
      %s33 = sshll.u32 %s31, 4
      %s34 = int_to_ptr.hbm [resolvable:$true] %s33
      %s35 = sshll.u32 [#allocation4], 4
      %s36 = int_to_ptr.vmem [resolvable:$true] %s35
      %38 = dma.hbm_to_vmem [thread:$0]  %s34, 32, %s36, [#allocation5]
    $region9: #{tpu_custom_call.1} parent=1 // pred_fallthru
      _
    // Predicated region
    $region10: #{tpu_custom_call.1} parent=1 // pred_check
      _
    $region11: #{tpu_custom_call.1} parent=1 // pred_check_branch
      %40 = sbr.rel (0) target = $region13
    $region12: #{tpu_custom_call.1} parent=1 // pred_region
      %s41 = sadd.s32 0, 0
      %p42 = scmp.lt.s32.totalorder %s41, 0
      %s43 = scalar_select %p42, %s41, 0
      %p44 = scmp.lt.s32.totalorder %s43, 0
      %s45 = scalar_select %p44, %s43, 0
      %s46 = smul.addr %s45, 2
      %s47 = scalar_lea.vmem %s2, %s46
      %s48 = sadd.s32 0, 0
      %p49 = scmp.lt.s32.totalorder %s48, 0
      %s50 = scalar_select %p49, %s48, 0
    $region13: #{tpu_custom_call.1} parent=1 // pred_fallthru
      _
    // Predicated region
    $region14: #{tpu_custom_call.1} parent=1 // pred_check
      _
    $region15: #{tpu_custom_call.1} parent=1 // pred_check_branch
      %52 = sbr.rel (0) target = $region17
    $region16: #{tpu_custom_call.1} parent=1 // pred_region
      %s53 = sadd.s32 0, 0
      %p54 = scmp.lt.s32.totalorder %s53, 0
      %s55 = scalar_select %p54, %s53, 0
      %p56 = scmp.lt.s32.totalorder %s55, 0
      %s57 = scalar_select %p56, %s55, 0
      %s58 = smul.addr %s57, 2
      %s59 = scalar_lea.vmem %s3, %s58
      %s60 = sadd.s32 0, 0
      %p61 = scmp.lt.s32.totalorder %s60, 0
      %s62 = scalar_select %p61, %s60, 0
    $region17: #{tpu_custom_call.1} parent=1 // pred_fallthru
      _
    // Predicated region
    $region18: #{tpu_custom_call.1} parent=1 // pred_check
      _
    $region19: #{tpu_custom_call.1} parent=1 // pred_check_branch
      %64 = sbr.rel (0) target = $region21
    $region20: #{tpu_custom_call.1} parent=1 // pred_region
      %66 = dma.done [#allocation5], 32
    $region21: #{tpu_custom_call.1} parent=1 // pred_fallthru
      _
    %s67 = sadd.s32 0, 0
    %p68 = scmp.lt.s32.totalorder %s67, 0
    %s69 = scalar_select %p68, %s67, 0
    %p70 = scmp.lt.s32.totalorder %s69, 0
    %s71 = scalar_select %p70, %s69, 0
    %s72 = smul.addr %s71, 2
    %s73 = scalar_lea.vmem %s0, %s72
    %s74 = sadd.s32 0, 0
    %p75 = scmp.lt.s32.totalorder %s74, 0
    %s76 = scalar_select %p75, %s74, 0
    %p77 = scmp.lt.s32.totalorder %s76, 0
    %s78 = scalar_select %p77, %s76, 0
    %s79 = smul.addr %s78, 2
    %s80 = scalar_lea.vmem %s2, %s79
    %s81 = sadd.s32 0, 0
    %p82 = scmp.lt.s32.totalorder %s81, 0
    %s83 = scalar_select %p82, %s81, 0
    %p84 = scmp.lt.s32.totalorder %s83, 0
    %s85 = scalar_select %p84, %s83, 0
    %s86 = smul.addr %s85, 2
    %s87 = scalar_lea.vmem %s3, %s86
    %s88 = sadd.s32 0, 0
    %p89 = scmp.lt.s32.totalorder %s88, 0
    %s90 = scalar_select %p89, %s88, 0
    %p91 = scmp.lt.s32.totalorder %s90, 0
    %s92 = scalar_select %p91, %s90, 0
    %s93 = smul.addr %s92, 2
    %s94 = scalar_lea.vmem %s0, %s93
    %s95 = sadd.s32 0, 0
    %p96 = scmp.lt.s32.totalorder %s95, 0
    %s97 = scalar_select %p96, %s95, 0
    %s98 = sadd.s32 0, 0
    %p99 = scmp.lt.s32.totalorder %s98, 0
    %s100 = scalar_select %p99, %s98, 0
    %s101 = sadd.s32 0, 0
    %p102 = scmp.lt.s32.totalorder %s101, 0
    %s103 = scalar_select %p102, %s101, 0
    %p104 = scmp.lt.s32.totalorder %s103, 0
    %s105 = scalar_select %p104, %s103, 0
    %s106 = smul.addr %s105, 2
    %s107 = scalar_lea.vmem %s2, %s106
    %s108 = sadd.s32 0, 0
    %p109 = scmp.lt.s32.totalorder %s108, 0
    %s110 = scalar_select %p109, %s108, 0
    %s111 = sadd.s32 0, 0
    %p112 = scmp.lt.s32.totalorder %s111, 0
    %s113 = scalar_select %p112, %s111, 0
    %p114 = scmp.lt.s32.totalorder %s113, 0
    %s115 = scalar_select %p114, %s113, 0
    %s116 = smul.addr %s115, 2
    %s117 = scalar_lea.vmem %s3, %s116
    %s118 = sadd.s32 0, 0
    %p119 = scmp.lt.s32.totalorder %s118, 0
    %s120 = scalar_select %p119, %s118, 0
    %p121 = scmp.eq.s32.totalorder 0, 0
    // Predicated region
    $region22: #{tpu_custom_call.1} parent=1 // pred_check
      %p122 = pneg %p121
    $region23: #{tpu_custom_call.1} parent=1 // pred_check_branch
      %124 = sbr.rel (%p122) target = $region25
    $region24: #{tpu_custom_call.1} parent=1 // pred_region
      %vm125 = vcmask 1024
      %126 = vst.msk [vmem:[#allocation2] sm:$0x3] %vm125, 0.0
      %127 = vst.msk [vmem:[#allocation3] sm:$0x3] %vm125, 0.0
    $region25: #{tpu_custom_call.1} parent=1 // pred_fallthru
      _
    %s128 = sadd.s32 0, 0
    %s129 = smul.u32 %s128, 2
    %v130 = vlaneseq
    %v131 = vshrl.u32 %v130, 7
    %v132 = vstv %s129
    %v133 = vadd.s32 %v132, %v131
    %vm134 = vcmp.lt.s32.totalorder %v133, 2
    %v135 = vld [vmem:[%s94] sm:$0x3]
    %v136 = vld [vmem:[%s117] sm:$0x3]
    %v137 = vlaneseq
    %v138 = vand.u32 %v137, 127
    %vm139 = vcmask 58368
    %v140 = vsel %vm139, %v135, -inf
    %141 = vmax.xlane.f32.xlu0 %v140
    %v142 = vpop.xlane.xlu0 %141
    %v143 = vsub.f32 %v135, %v142
    %v144 = vmul.f32 %v143, 1.442695
    %v145 = vpow.pop %v144
    %v146 = vsel %vm139, %v145, 0.0
    %147 = vadd.xlane.f32.xlu0 %v146
    %v148 = vpop.xlane.xlu0 %147
    %v149 = vlog2.pop %v148
    %v150 = vmul.f32 %v149, 0.6931472
    %v151 = vadd.f32 %v142, %v150
    %152 = vset.pattern.permute.xlu0 0
    %153 = vperm.xlu0 %152, %v136
    %v154 = vpop.permute.xlu0 %153
    %vm155 = vcmp.eq.s32.totalorder %v138, %v154
    %v156 = vsel %vm155, %v135, 0.0
    %v157 = vsel %vm139, %v156, 0.0
    %158 = vadd.xlane.f32.xlu0 %v157
    %v159 = vpop.xlane.xlu0 %158
    %v160 = vld [vmem:[#allocation2] sm:$0x3]
    %v161 = vsub.f32 %v151, %v159
    %v162 = vsel %vm134, %v161, 0.0
    %v163 = vadd.f32 %v160, %v162
    %vm164 = vcmask 1024
    %165 = vst.msk [vmem:[#allocation2] sm:$0x3] %vm164, %v163
    %v166 = vld [vmem:[%s107] sm:$0x3]
    %v167 = vld [vmem:[#allocation4] sm:$0x3]
    %v168 = vsub.f32 %v166, %v167
    %v169 = vmul.f32 %v168, %v168
    %vm170 = vcmask 254976
    %v171 = vsel %vm170, %v169, 0.0
    %172 = vadd.xlane.f32.xlu0 %v171
    %v173 = vpop.xlane.xlu0 %172
    %v174 = vld [vmem:[#allocation3] sm:$0x3]
    %v175 = vsel %vm134, %v173, 0.0
    %v176 = vadd.f32 %v174, %v175
    %177 = vst.msk [vmem:[#allocation3] sm:$0x3] %vm164, %v176
    // Predicated region
    $region26: #{tpu_custom_call.1} parent=1 // pred_check
      %p178 = pneg %p121
    $region27: #{tpu_custom_call.1} parent=1 // pred_check_branch
      %180 = sbr.rel (%p178) target = $region29
    $region28: #{tpu_custom_call.1} parent=1 // pred_region
      %v181 = vld [vmem:[#allocation2] sm:$0x3]
      %v182 = vsel %vm164, %v181, 0.0
      %183 = vadd.xlane.f32.xlu0 %v182
      %v184 = vpop.xlane.xlu0 %183
      %v185 = vrot.slane %v184, 4
      %v186 = vadd.f32 %v184, %v185
      %v187 = vrot.slane %v186, 2
      %v188 = vadd.f32 %v186, %v187
      %v189 = vrot.slane %v188, 1
      %v190 = vadd.f32 %v188, %v189
      %s191 = vtos %v190
      %s192 = smul.f32 %s191, 0.5
      %v193 = vld [vmem:[#allocation3] sm:$0x3]
      %v194 = vsel %vm164, %v193, 0.0
      %195 = vadd.xlane.f32.xlu0 %v194
      %v196 = vpop.xlane.xlu0 %195
      %v197 = vrot.slane %v196, 4
      %v198 = vadd.f32 %v196, %v197
      %v199 = vrot.slane %v198, 2
      %v200 = vadd.f32 %v198, %v199
      %v201 = vrot.slane %v200, 1
      %v202 = vadd.f32 %v200, %v201
      %s203 = vtos %v202
      %s204 = smul.f32 %s203, 0.00015625
      %s205 = sadd.f32 %s192, %s204
      %v206 = vstv %s205
      %v207 = vadd.f32 %v206, 0.0
      %208 = vst [vmem:[#allocation7] sm:$0x1] %v207
    $region29: #{tpu_custom_call.1} parent=1 // pred_fallthru
      _
    // Predicated region
    $region30: #{tpu_custom_call.1} parent=1 // pred_check
      _
    $region31: #{tpu_custom_call.1} parent=1 // pred_check_branch
      %210 = sbr.rel (0) target = $region33
    $region32: #{tpu_custom_call.1} parent=1 // pred_region
      %212 = vsyncadd [#allocation6], 0
      %s214 = sshll.u32 [#allocation7], 4
      %s215 = int_to_ptr.vmem [resolvable:$true] %s214
      %s216 = sshll.u32 %s4, 4
      %s217 = int_to_ptr.hbm [resolvable:$true] %s216
      %219 = dma.vmem_to_hbm [thread:$0]  %s215, 16, %s217, [#allocation6]
    $region33: #{tpu_custom_call.1} parent=1 // pred_fallthru
      _
    // Predicated region
    $region34: #{tpu_custom_call.1} parent=1 // pred_check
      _
    $region35: #{tpu_custom_call.1} parent=1 // pred_check_branch
      %221 = sbr.rel (0) target = $region37
    $region36: #{tpu_custom_call.1} parent=1 // pred_region
      %223 = dma.done [#allocation6], 16
    $region37: #{tpu_custom_call.1} parent=1 // pred_fallthru
      _
    %224 = vsyncpa [#allocation5], 1
    %225 = vsyncpa [#allocation6], 1

</llo_original>
